<compile_context>
chip_gen: v6e
topology: v6e:2x2x1
jax: 0.10.0
libtpu: 0.0.40
codegen_flags: <defaults>
</compile_context>

<pallas_src>
import math

import jax
import jax.numpy as jnp
from jax.experimental import pallas as pl
from jax.experimental.pallas import tpu as pltpu


def _gelu(x):
    # DeBERTa's ContextPooler uses exact (erf) gelu; the tanh approximation is
    # used here because tanh is guaranteed to lower onto the TPU EUP.
    # TODO(synk): switch to erf-based exact gelu if bit-exact parity with HF is required.
    c = math.sqrt(2.0 / math.pi)
    return 0.5 * x * (1.0 + jnp.tanh(c * (x + 0.044715 * x * x * x)))


def _leaky_relu(x, negative_slope=0.01):
    # nn.LeakyReLU default negative_slope=0.01
    return jnp.where(x >= 0, x, negative_slope * x)


def split_baseline_kernel(
    cls_ref,       # (3B, H)  bf16 stacked CLS states [a; t; c]   (resident)
    wp_ref,        # (H, H)   bf16 pooler dense weight            (resident)
    bp_ref,        # (1, H)   f32  pooler dense bias              (resident)
    w1_ref,        # (3H, tn) bf16 classifier layer-1 column tile (streamed)
    b1_ref,        # (1, tn)  f32  classifier layer-1 bias tile
    w2t_ref,       # (1, tn)  f32  classifier layer-2 weight tile (transposed)
    b2_ref,        # (1,)     f32  classifier layer-2 bias        (SMEM)
    out_ref,       # (B, 1)   f32  sigmoid(logits)
    pooled_scr,    # (3B, H)  f32  pooled CLS features (persists across grid)
    acc_scr,       # (B, 1)   f32  logits accumulator
):
    j = pl.program_id(0)
    B = out_ref.shape[0]
    H = wp_ref.shape[0]

    @pl.when(j == 0)
    def _init():
        # Fused ContextPooler: ONE (3B,H)@(H,H) matmul covers anchors, targets
        # and contexts (dropout is identity in eval mode).
        p = jnp.dot(cls_ref[...], wp_ref[...], preferred_element_type=jnp.float32)
        pooled_scr[...] = _gelu(p + bp_ref[...])
        acc_scr[...] = jnp.zeros_like(acc_scr)

    # Classifier layer 1 on this column tile.  feat = cat(pooled_a/t/c, -1) is
    # never materialized: it is mathematically identical to summing partial
    # dots against static row-slices of the w1 tile.
    pa = pooled_scr[0 * B:1 * B, :].astype(w1_ref.dtype)
    pt = pooled_scr[1 * B:2 * B, :].astype(w1_ref.dtype)
    pc = pooled_scr[2 * B:3 * B, :].astype(w1_ref.dtype)
    h = jnp.dot(pa, w1_ref[0 * H:1 * H, :], preferred_element_type=jnp.float32)
    h += jnp.dot(pt, w1_ref[1 * H:2 * H, :], preferred_element_type=jnp.float32)
    h += jnp.dot(pc, w1_ref[2 * H:3 * H, :], preferred_element_type=jnp.float32)
    h = _leaky_relu(h + b1_ref[...])

    # Classifier layer 2 (output width 1): VPU multiply + lane reduction instead
    # of an N=1 MXU matmul; accumulate this tile's logits contribution.
    acc_scr[...] += jnp.sum(h * w2t_ref[...], axis=-1, keepdims=True)

    @pl.when(j == pl.num_programs(0) - 1)
    def _finalize():
        out_ref[...] = jax.nn.sigmoid(acc_scr[...] + b2_ref[0])


def _pick_block_n(dim3h, requested):
    """Largest column tile <= `requested` that is a multiple of 128 and divides 3H."""
    if dim3h % 128 != 0:
        return dim3h  # toy / unaligned sizes: single full-width tile
    bn = max(128, (min(requested, dim3h) // 128) * 128)
    while dim3h % bn:
        bn -= 128
    return bn


def split_baseline_forward(out_a, out_t, out_c, params, *, block_n=512):
    """out_*: (B, S, H) final hidden states from the (untranslated) encoder."""
    B, _, H = out_a.shape
    dim3h = 3 * H

    # ContextPooler uses only the first (CLS) token; stack the three sequences
    # along rows so the pooler runs as one (3B, H) @ (H, H) matmul in-kernel.
    cls = jnp.concatenate(
        [out_a[:, 0, :], out_t[:, 0, :], out_c[:, 0, :]], axis=0
    ).astype(jnp.bfloat16)

    tn = _pick_block_n(dim3h, block_n)
    grid = (dim3h // tn,)

    resident = lambda j: (0, 0)   # constant block index -> stays in VMEM, no re-DMA
    col_tile = lambda j: (0, j)   # stream w1/b1/w2t column tiles (double-buffered)

    out = pl.pallas_call(
        split_baseline_kernel,
        out_shape=jax.ShapeDtypeStruct((B, 1), jnp.float32),
        grid_spec=pltpu.PrefetchScalarGridSpec(
            num_scalar_prefetch=0,
            grid=grid,
            in_specs=[
                pl.BlockSpec((3 * B, H), resident),                  # cls (bf16)
                pl.BlockSpec((H, H), resident),                      # wp  (bf16)
                pl.BlockSpec((1, H), resident),                      # bp  (f32)
                pl.BlockSpec((dim3h, tn), col_tile),                 # w1  (bf16)
                pl.BlockSpec((1, tn), col_tile),                     # b1  (f32)
                pl.BlockSpec((1, tn), col_tile),                     # w2t (f32)
                pl.BlockSpec(memory_space=pltpu.MemorySpace.SMEM),   # b2 scalar
            ],
            out_specs=pl.BlockSpec((B, 1), resident),
            scratch_shapes=[
                pltpu.VMEM((3 * B, H), jnp.float32),  # pooled activations
                pltpu.VMEM((B, 1), jnp.float32),      # logits accumulator
            ],
        ),
        compiler_params=pltpu.CompilerParams(
            dimension_semantics=("arbitrary",),  # grid axis is a reduction
        ),
    )(
        cls,
        params["wp"], params["bp"],
        params["w1"], params["b1"],
        params["w2t"], params["b2"],
    )
    # torch.sigmoid(logits).squeeze()
    return jnp.squeeze(out)


def init_params(key, hidden):
    """Deterministic synthetic parameters.

    Classifier linears follow the module's init_weights():
      kaiming_normal_(weight, a=sqrt(5)) -> std = sqrt(2/(1+5^... )) /sqrt(fan_in)
      i.e. std = sqrt(2/(1+5)) / sqrt(3H); bias = 0.
    Pooler dense stands in for pretrained weights (normal(0, 0.02), zero bias).
    Matmul weights (wp, w1) are stored in bf16 (halves HBM traffic; f32 accum),
    biases and the lane-reduced w2 stay f32.  Weights are stored (in, out) so
    the kernel computes x @ W + b; w2 is stored transposed as (1, 3H).
    """
    dim = 3 * hidden
    k0, k1, k2 = jax.random.split(key, 3)

    wp = (0.02 * jax.random.normal(k0, (hidden, hidden), jnp.float32)).astype(jnp.bfloat16)
    bp = jnp.zeros((1, hidden), jnp.float32)

    gain = math.sqrt(2.0 / (1.0 + 5.0))
    w1 = ((gain / math.sqrt(dim)) * jax.random.normal(k1, (dim, dim), jnp.float32)
          ).astype(jnp.bfloat16)
    b1 = jnp.zeros((1, dim), jnp.float32)
    w2t = (gain / math.sqrt(dim)) * jax.random.normal(k2, (1, dim), jnp.float32)
    b2 = jnp.zeros((1,), jnp.float32)

    return dict(wp=wp, bp=bp, w1=w1, b1=b1, w2t=w2t, b2=b2)


def reference_forward(out_a, out_t, out_c, p):
    """Pure-JAX reference (same math / same bf16 operand casts) for validation."""
    def pool(x):
        cls = x[:, 0, :].astype(jnp.bfloat16)
        y = jnp.dot(cls, p["wp"], preferred_element_type=jnp.float32) + p["bp"]
        return _gelu(y)

    feat = jnp.concatenate([pool(out_a), pool(out_t), pool(out_c)], axis=-1)
    h = jnp.dot(feat.astype(jnp.bfloat16), p["w1"],
                preferred_element_type=jnp.float32) + p["b1"]
    h = _leaky_relu(h)
    logits = jnp.sum(h * p["w2t"], axis=-1, keepdims=True) + p["b2"]
    return jnp.squeeze(jax.nn.sigmoid(logits))


if __name__ == "__main__":
    # TODO(synk): the pretrained DeBERTa backbone has no synthetic Pallas
    # equivalent; its outputs are simulated by random hidden states.
    # H=128 keeps lanes full (128-aligned) while staying small; block_n=128
    # forces a 3-step grid so the w1-tiling / accumulation path is exercised.
    B, S, H = 2, 8, 128
    key = jax.random.PRNGKey(0)
    ka, kt, kc, kp = jax.random.split(key, 4)

    out_a = jax.random.normal(ka, (B, S, H), jnp.float32)
    out_t = jax.random.normal(kt, (B, S, H), jnp.float32)
    out_c = jax.random.normal(kc, (B, S, H), jnp.float32)
    params = init_params(kp, H)

    logits = split_baseline_forward(out_a, out_t, out_c, params, block_n=128)
    logits = jax.block_until_ready(logits)

    ref = reference_forward(out_a, out_t, out_c, params)
    assert logits.shape == (B,), logits.shape
    assert jnp.allclose(logits, ref, atol=1e-4, rtol=1e-4), (logits, ref)

    print("KERNEL_OK")
</pallas_src>

<mosaic_0001>
module attributes {stable_mosaic.version = 11 : i64} {
  func.func @split_baseline_kernel(%arg0: i32, %arg1: memref<6x128xbf16, #tpu.memory_space<vmem>>, %arg2: memref<128x128xbf16, #tpu.memory_space<vmem>>, %arg3: memref<1x128xf32, #tpu.memory_space<vmem>>, %arg4: memref<384x128xbf16, #tpu.memory_space<vmem>>, %arg5: memref<1x128xf32, #tpu.memory_space<vmem>>, %arg6: memref<1x128xf32, #tpu.memory_space<vmem>>, %arg7: memref<1xf32, #tpu.memory_space<smem>>, %arg8: memref<2x1xf32, #tpu.memory_space<vmem>>, %arg9: memref<6x128xf32, #tpu.memory_space<vmem>>, %arg10: memref<2x1xf32, #tpu.memory_space<vmem>>) attributes {dimension_semantics = [#tpu.dimension_semantics<arbitrary>], iteration_bounds = array<i64: 3>, scalar_prefetch = 0 : i64, scratch_operands = 2 : i64, tpu.core_type = #tpu.core_type<tc>, window_params = [{pipeline_mode = #tpu.pipeline_mode<synchronous>, transform_indices = @transform_0, window_bounds = array<i64: 6, 128>}, {pipeline_mode = #tpu.pipeline_mode<synchronous>, transform_indices = @transform_1, window_bounds = array<i64: 128, 128>}, {pipeline_mode = #tpu.pipeline_mode<synchronous>, transform_indices = @transform_2, window_bounds = array<i64: 1, 128>}, {transform_indices = @transform_3, window_bounds = array<i64: 384, 128>}, {transform_indices = @transform_4, window_bounds = array<i64: 1, 128>}, {transform_indices = @transform_5, window_bounds = array<i64: 1, 128>}, {transform_indices = @transform_6, window_bounds = array<i64: 1>}, {pipeline_mode = #tpu.pipeline_mode<synchronous>, transform_indices = @transform_7, window_bounds = array<i64: 2, 1>}]} {
    %c0_i32 = arith.constant 0 : i32
    %0 = arith.cmpi eq, %arg0, %c0_i32 : i32
    %1 = arith.extui %0 : i1 to i32
    %c0_i32_0 = arith.constant 0 : i32
    %2 = arith.cmpi ne, %1, %c0_i32_0 : i32
    scf.if %2 {
      %c0_22 = arith.constant 0 : index
      %c0_23 = arith.constant 0 : index
      %36 = vector.load %arg1[%c0_22, %c0_23] : memref<6x128xbf16, #tpu.memory_space<vmem>>, vector<6x128xbf16>
      %c0_24 = arith.constant 0 : index
      %c0_25 = arith.constant 0 : index
      %37 = vector.load %arg2[%c0_24, %c0_25] : memref<128x128xbf16, #tpu.memory_space<vmem>>, vector<128x128xbf16>
      %cst_26 = arith.constant dense<0.000000e+00> : vector<6x128xf32>
      %38 = tpu.matmul %36, %37, %cst_26 {dimension_numbers = #tpu.dot_dimension_numbers<[1], [0], [0], [1], [0, 0, 1, 1], [], []>} : vector<6x128xbf16>, vector<128x128xbf16>, vector<6x128xf32> -> vector<6x128xf32>
      %c0_27 = arith.constant 0 : index
      %c0_28 = arith.constant 0 : index
      %39 = vector.load %arg3[%c0_27, %c0_28] : memref<1x128xf32, #tpu.memory_space<vmem>>, vector<1x128xf32>
      %40 = vector.broadcast %39 : vector<1x128xf32> to vector<6x128xf32>
      %41 = arith.addf %38, %40 : vector<6x128xf32>
      %cst_29 = arith.constant 5.000000e-01 : f32
      %42 = vector.broadcast %cst_29 : f32 to vector<6x128xf32>
      %43 = arith.mulf %42, %41 : vector<6x128xf32>
      %cst_30 = arith.constant 4.471500e-02 : f32
      %44 = vector.broadcast %cst_30 : f32 to vector<6x128xf32>
      %45 = arith.mulf %44, %41 : vector<6x128xf32>
      %46 = arith.mulf %45, %41 : vector<6x128xf32>
      %47 = arith.mulf %46, %41 : vector<6x128xf32>
      %48 = arith.addf %41, %47 : vector<6x128xf32>
      %cst_31 = arith.constant 0.797884583 : f32
      %49 = vector.broadcast %cst_31 : f32 to vector<6x128xf32>
      %50 = arith.mulf %49, %48 : vector<6x128xf32>
      %51 = math.tanh %50 : vector<6x128xf32>
      %cst_32 = arith.constant 1.000000e+00 : f32
      %52 = vector.broadcast %cst_32 : f32 to vector<6x128xf32>
      %53 = arith.addf %52, %51 : vector<6x128xf32>
      %54 = arith.mulf %43, %53 : vector<6x128xf32>
      %c0_33 = arith.constant 0 : index
      %c0_34 = arith.constant 0 : index
      %55 = vector.load %arg9[%c0_33, %c0_34] : memref<6x128xf32, #tpu.memory_space<vmem>>, vector<6x128xf32>
      tpu.vector_store %arg9[%c0_33, %c0_34], %54 {strides = array<i32>} : memref<6x128xf32, #tpu.memory_space<vmem>>, vector<6x128xf32>,
      %cst_35 = arith.constant 0.000000e+00 : f32
      %56 = vector.broadcast %cst_35 : f32 to vector<2x1xf32>
      %c0_36 = arith.constant 0 : index
      %c0_37 = arith.constant 0 : index
      %57 = vector.load %arg10[%c0_36, %c0_37] : memref<2x1xf32, #tpu.memory_space<vmem>>, vector<2x1xf32>
      tpu.vector_store %arg10[%c0_36, %c0_37], %56 {strides = array<i32>} : memref<2x1xf32, #tpu.memory_space<vmem>>, vector<2x1xf32>,
    } else {
    }
    %c0 = arith.constant 0 : index
    %c0_1 = arith.constant 0 : index
    %3 = vector.load %arg9[%c0, %c0_1] : memref<6x128xf32, #tpu.memory_space<vmem>>, vector<2x128xf32>
    %4 = arith.truncf %3 : vector<2x128xf32> to vector<2x128xbf16>
    %c2 = arith.constant 2 : index
    %c0_2 = arith.constant 0 : index
    %5 = vector.load %arg9[%c2, %c0_2] : memref<6x128xf32, #tpu.memory_space<vmem>>, vector<2x128xf32>
    %6 = arith.truncf %5 : vector<2x128xf32> to vector<2x128xbf16>
    %c4 = arith.constant 4 : index
    %c0_3 = arith.constant 0 : index
    %7 = vector.load %arg9[%c4, %c0_3] : memref<6x128xf32, #tpu.memory_space<vmem>>, vector<2x128xf32>
    %8 = arith.truncf %7 : vector<2x128xf32> to vector<2x128xbf16>
    %c0_4 = arith.constant 0 : index
    %c0_5 = arith.constant 0 : index
    %9 = vector.load %arg4[%c0_4, %c0_5] : memref<384x128xbf16, #tpu.memory_space<vmem>>, vector<128x128xbf16>
    %cst = arith.constant dense<0.000000e+00> : vector<2x128xf32>
    %10 = tpu.matmul %4, %9, %cst {dimension_numbers = #tpu.dot_dimension_numbers<[1], [0], [0], [1], [0, 0, 1, 1], [], []>} : vector<2x128xbf16>, vector<128x128xbf16>, vector<2x128xf32> -> vector<2x128xf32>
    %c128 = arith.constant 128 : index
    %c0_6 = arith.constant 0 : index
    %11 = vector.load %arg4[%c128, %c0_6] : memref<384x128xbf16, #tpu.memory_space<vmem>>, vector<128x128xbf16>
    %cst_7 = arith.constant dense<0.000000e+00> : vector<2x128xf32>
    %12 = tpu.matmul %6, %11, %cst_7 {dimension_numbers = #tpu.dot_dimension_numbers<[1], [0], [0], [1], [0, 0, 1, 1], [], []>} : vector<2x128xbf16>, vector<128x128xbf16>, vector<2x128xf32> -> vector<2x128xf32>
    %13 = arith.addf %10, %12 : vector<2x128xf32>
    %c256 = arith.constant 256 : index
    %c0_8 = arith.constant 0 : index
    %14 = vector.load %arg4[%c256, %c0_8] : memref<384x128xbf16, #tpu.memory_space<vmem>>, vector<128x128xbf16>
    %cst_9 = arith.constant dense<0.000000e+00> : vector<2x128xf32>
    %15 = tpu.matmul %8, %14, %cst_9 {dimension_numbers = #tpu.dot_dimension_numbers<[1], [0], [0], [1], [0, 0, 1, 1], [], []>} : vector<2x128xbf16>, vector<128x128xbf16>, vector<2x128xf32> -> vector<2x128xf32>
    %16 = arith.addf %13, %15 : vector<2x128xf32>
    %c0_10 = arith.constant 0 : index
    %c0_11 = arith.constant 0 : index
    %17 = vector.load %arg5[%c0_10, %c0_11] : memref<1x128xf32, #tpu.memory_space<vmem>>, vector<1x128xf32>
    %18 = vector.broadcast %17 : vector<1x128xf32> to vector<2x128xf32>
    %19 = arith.addf %16, %18 : vector<2x128xf32>
    %cst_12 = arith.constant 0.000000e+00 : f32
    %20 = vector.broadcast %cst_12 : f32 to vector<2x128xf32>
    %21 = arith.cmpf oge, %19, %20 : vector<2x128xf32>
    %cst_13 = arith.constant 0.00999999977 : f32
    %22 = vector.broadcast %cst_13 : f32 to vector<2x128xf32>
    %23 = arith.mulf %22, %19 : vector<2x128xf32>
    %24 = arith.select %21, %19, %23 : vector<2x128xi1>, vector<2x128xf32>
    %c0_14 = arith.constant 0 : index
    %c0_15 = arith.constant 0 : index
    %25 = vector.load %arg10[%c0_14, %c0_15] : memref<2x1xf32, #tpu.memory_space<vmem>>, vector<2x1xf32>
    %c0_16 = arith.constant 0 : index
    %c0_17 = arith.constant 0 : index
    %26 = vector.load %arg6[%c0_16, %c0_17] : memref<1x128xf32, #tpu.memory_space<vmem>>, vector<1x128xf32>
    %27 = vector.broadcast %26 : vector<1x128xf32> to vector<2x128xf32>
    %28 = arith.mulf %24, %27 : vector<2x128xf32>
    %cst_18 = arith.constant dense<0.000000e+00> : vector<2xf32>
    %29 = vector.multi_reduction <add>, %28, %cst_18 [1] : vector<2x128xf32> to vector<2xf32>
    %30 = vector.shape_cast %29 : vector<2xf32> to vector<2x1xf32>
    %31 = arith.addf %25, %30 : vector<2x1xf32>
    %c0_19 = arith.constant 0 : index
    %c0_20 = arith.constant 0 : index
    %32 = vector.load %arg10[%c0_19, %c0_20] : memref<2x1xf32, #tpu.memory_space<vmem>>, vector<2x1xf32>
    tpu.vector_store %arg10[%c0_19, %c0_20], %31 {strides = array<i32>} : memref<2x1xf32, #tpu.memory_space<vmem>>, vector<2x1xf32>,
    %c2_i32 = arith.constant 2 : i32
    %33 = arith.cmpi eq, %arg0, %c2_i32 : i32
    %34 = arith.extui %33 : i1 to i32
    %c0_i32_21 = arith.constant 0 : i32
    %35 = arith.cmpi ne, %34, %c0_i32_21 : i32
    scf.if %35 {
      %c0_22 = arith.constant 0 : index
      %c0_23 = arith.constant 0 : index
      %36 = vector.load %arg10[%c0_22, %c0_23] : memref<2x1xf32, #tpu.memory_space<vmem>>, vector<2x1xf32>
      %c0_24 = arith.constant 0 : index
      %37 = memref.load %arg7[%c0_24] : memref<1xf32, #tpu.memory_space<smem>>
      %38 = vector.broadcast %37 : f32 to vector<2x1xf32>
      %39 = arith.addf %36, %38 : vector<2x1xf32>
      %40 = arith.negf %39 : vector<2x1xf32>
      %41 = math.exp %40 : vector<2x1xf32>
      %cst_25 = arith.constant 1.000000e+00 : f32
      %42 = vector.broadcast %cst_25 : f32 to vector<2x1xf32>
      %43 = arith.addf %42, %41 : vector<2x1xf32>
      %44 = arith.divf %42, %43 : vector<2x1xf32>
      %c0_26 = arith.constant 0 : index
      %c0_27 = arith.constant 0 : index
      %45 = vector.load %arg8[%c0_26, %c0_27] : memref<2x1xf32, #tpu.memory_space<vmem>>, vector<2x1xf32>
      tpu.vector_store %arg8[%c0_26, %c0_27], %44 {strides = array<i32>} : memref<2x1xf32, #tpu.memory_space<vmem>>, vector<2x1xf32>,
    } else {
    }
    return
  }
  func.func @transform_0(%arg0: i32) -> (i32, i32) {
    %c0_i32 = arith.constant 0 : i32
    %c0_i32_0 = arith.constant 0 : i32
    %c0_i32_1 = arith.constant 0 : i32
    return %c0_i32, %c0_i32_0 : i32, i32
  }
  func.func @transform_1(%arg0: i32) -> (i32, i32) {
    %c0_i32 = arith.constant 0 : i32
    %c0_i32_0 = arith.constant 0 : i32
    %c0_i32_1 = arith.constant 0 : i32
    return %c0_i32, %c0_i32_0 : i32, i32
  }
  func.func @transform_2(%arg0: i32) -> (i32, i32) {
    %c0_i32 = arith.constant 0 : i32
    %c0_i32_0 = arith.constant 0 : i32
    %c0_i32_1 = arith.constant 0 : i32
    return %c0_i32, %c0_i32_0 : i32, i32
  }
  func.func @transform_3(%arg0: i32) -> (i32, i32) {
    %c0_i32 = arith.constant 0 : i32
    %c0_i32_0 = arith.constant 0 : i32
    return %c0_i32, %arg0 : i32, i32
  }
  func.func @transform_4(%arg0: i32) -> (i32, i32) {
    %c0_i32 = arith.constant 0 : i32
    %c0_i32_0 = arith.constant 0 : i32
    return %c0_i32, %arg0 : i32, i32
  }
  func.func @transform_5(%arg0: i32) -> (i32, i32) {
    %c0_i32 = arith.constant 0 : i32
    %c0_i32_0 = arith.constant 0 : i32
    return %c0_i32, %arg0 : i32, i32
  }
  func.func @transform_6(%arg0: i32) -> i32 {
    %c0_i32 = arith.constant 0 : i32
    %c0_i32_0 = arith.constant 0 : i32
    return %c0_i32 : i32
  }
  func.func @transform_7(%arg0: i32) -> (i32, i32) {
    %c0_i32 = arith.constant 0 : i32
    %c0_i32_0 = arith.constant 0 : i32
    %c0_i32_1 = arith.constant 0 : i32
    return %c0_i32, %c0_i32_0 : i32, i32
  }
}

</mosaic_0001>

<llo_original>
// kernel: tpu_custom_call.1
$region0: #{tpu_custom_call.1}
  #allocation0 [shape = 'u32[]', space=smem, size = 0x4, offset = 0x4, fixed_abs, tag = 'smem constant byte address 0x4 - core index']
  #allocation1 [shape = 'u32[144,128]{1,0:T(1,128)}', space=vmem, size = 0x12000, scoped, tag = 'internal scratch']
  #allocation2 [shape = 'f32[6,128]{1,0:T(8,128)}', space=vmem, size = 0x1000, scoped, tag = 'scratch operand']
  #allocation3 [shape = 'f32[2,1]{1,0:T(2,128)}', space=vmem, size = 0x400, scoped, tag = 'scratch operand']
  #allocation4 [shape = 'f32[1]{0:T(128)S(6)}', space=smem, size = 0x200, scoped, tag = 'scoped memory for tpu_custom_call.1']
  %s0 = inlined_call_operand.hbm [shape: bf16[6,128], index: 0, kind: input, shape index: {}]
  %s1 = inlined_call_operand.hbm [shape: bf16[128,128], index: 1, kind: input, shape index: {}]
  %s2 = inlined_call_operand.vmem [shape: f32[1,128], index: 2, kind: input, shape index: {}]
  %s3 = inlined_call_operand.hbm [shape: bf16[384,384], index: 3, kind: input, shape index: {}]
  %s4 = inlined_call_operand.vmem [shape: f32[1,384], index: 4, kind: input, shape index: {}]
  %s5 = inlined_call_operand.vmem [shape: f32[1,384], index: 5, kind: input, shape index: {}]
  %s6 = inlined_call_operand.<no memory space> [shape: f32[1], index: 6, kind: input, shape index: {}]
  %s7 = inlined_call_operand.vmem [shape: f32[2,1], index: 7, kind: output, shape index: {}]
  %s8 = sld [smem:[#allocation0]]
  $region81: #{tpu_custom_call.1} parent=0
    _
  %s10 = ssub.s32 1, %s8
  %s11 = scalar_select 0, %s10, %s8
  %12 = sst [smem:[#allocation4]] %s6
  $region1: #{tpu_custom_call.1} parent=0
    #allocation5 [shape = 'u8[2048]{0}', space=vmem, size = 0x800, scoped, tag = 'input window, operand 0, single buffered']
    #allocation6 [shape = 's32[2]{0}', space=sflag, size = 0x8, scoped, tag = 'scoped memory for tpu_custom_call.1']
    #allocation7 [shape = 'u8[32768]{0}', space=vmem, size = 0x8000, scoped, tag = 'input window, operand 1, single buffered']
    #allocation8 [shape = 's32[1]{0}', space=sflag, size = 0x4, scoped, tag = 'scoped memory for tpu_custom_call.1']
    #allocation9 [shape = 'u8[196608]{0}', space=vmem, size = 0x30000, scoped, tag = 'input window, operand 3']
    %13 = vsyncpa [#allocation6], 0
    %14 = vsyncpa [#allocation8], 0
    loop: start=0, step=1, limit=5
    $region2: #{tpu_custom_call.1} parent=1 // loop_pre_header
      _
    $region3: #{tpu_custom_call.1} parent=1 // loop_header
      %s16 = sphi 0, %s20
      %p17 = scmp.ge.s32.totalorder %s16, 5
      %s24 = sphi 0, %s24
      %s26 = sphi 0, %s24
      %s27 = sphi 0, %s26
      %s41 = sphi 0, %s27
      %s45 = sphi 0, %s45
      %s47 = sphi 0, %s45
      %s48 = sphi 0, %s47
      %s62 = sphi 0, %s48
      %s66 = sphi 0, %s66
      %s68 = sphi 0, %s66
      %s69 = sphi 0, %s68
      %s83 = sphi 0, %s69
      %s89 = sphi 0, %s91
      %s92 = sphi 0, %s89
      %s93 = sphi 0, %s92
      %s109 = sphi 0, %s93
      %s115 = sphi 0, %s117
      %s118 = sphi 0, %s115
      %s119 = sphi 0, %s118
      %s135 = sphi 0, %s119
      %s141 = sphi 0, %s143
      %s144 = sphi 0, %s141
      %s145 = sphi 0, %s144
      %s161 = sphi 0, %s145
      %s165 = sphi 0, %s165
      %s167 = sphi 0, %s165
      %s168 = sphi 0, %s167
      %s182 = sphi 0, %s168
      %s186 = sphi 0, %s186
      %s188 = sphi 0, %s186
      %s189 = sphi 0, %s188
      %s203 = sphi 0, %s189
    $region4: #{tpu_custom_call.1} parent=1 // loop_header_branch
      %19 = sbr.rel (%p17) target = $region8
    $region5: #{tpu_custom_call.1} parent=1 // loop_body
      %s21 = ssub.s32 %s16, 1
      %s22 = ssub.s32 %s16, 2
      %s23 = sadd.s32 %s16, 1
      %s25 = sadd.s32 %s24, 1
      %p28 = scmp.eq.s32.totalorder %s16, 2
      %p29 = scmp.ne.s32.totalorder %s24, %s26
      %p30 = scmp.eq.s32.totalorder %s16, 0
      %p31 = por %p29, %p30
      %p32 = scmp.ne.s32.totalorder %s24, %s26
      %p33 = scmp.eq.s32.totalorder %s21, 2
      %p34 = por %p32, %p33
      %p35 = scmp.ne.s32.totalorder %s26, %s27
      %p36 = scmp.eq.s32.totalorder %s21, 0
      %p37 = por %p35, %p36
      %p38 = scmp.ne.s32.totalorder %s26, %s27
      %p39 = scmp.eq.s32.totalorder %s22, 2
      %p40 = por %p38, %p39
      %p42 = scmp.ne.s32.totalorder %s27, %s41
      %p43 = scmp.eq.s32.totalorder %s22, 0
      %p44 = por %p42, %p43
      %s46 = sadd.s32 %s45, 1
      %p49 = scmp.eq.s32.totalorder %s16, 2
      %p50 = scmp.ne.s32.totalorder %s45, %s47
      %p51 = scmp.eq.s32.totalorder %s16, 0
      %p52 = por %p50, %p51
      %p53 = scmp.ne.s32.totalorder %s45, %s47
      %p54 = scmp.eq.s32.totalorder %s21, 2
      %p55 = por %p53, %p54
      %p56 = scmp.ne.s32.totalorder %s47, %s48
      %p57 = scmp.eq.s32.totalorder %s21, 0
      %p58 = por %p56, %p57
      %p59 = scmp.ne.s32.totalorder %s47, %s48
      %p60 = scmp.eq.s32.totalorder %s22, 2
      %p61 = por %p59, %p60
      %p63 = scmp.ne.s32.totalorder %s48, %s62
      %p64 = scmp.eq.s32.totalorder %s22, 0
      %p65 = por %p63, %p64
      %s67 = sadd.s32 %s66, 1
      %p70 = scmp.eq.s32.totalorder %s16, 2
      %p71 = scmp.ne.s32.totalorder %s66, %s68
      %p72 = scmp.eq.s32.totalorder %s16, 0
      %p73 = por %p71, %p72
      %p74 = scmp.ne.s32.totalorder %s66, %s68
      %p75 = scmp.eq.s32.totalorder %s21, 2
      %p76 = por %p74, %p75
      %p77 = scmp.ne.s32.totalorder %s68, %s69
      %p78 = scmp.eq.s32.totalorder %s21, 0
      %p79 = por %p77, %p78
      %p80 = scmp.ne.s32.totalorder %s68, %s69
      %p81 = scmp.eq.s32.totalorder %s22, 2
      %p82 = por %p80, %p81
      %p84 = scmp.ne.s32.totalorder %s69, %s83
      %p85 = scmp.eq.s32.totalorder %s22, 0
      %p86 = por %p84, %p85
      %s87 = ssub.s32 %s16, %s23
      %p88 = scmp.eq.s32.totalorder %s87, 0
      %s90 = sadd.s32 %s89, 1
      %s91 = scalar_select %p88, %s89, %s90
      %p94 = pneg %p88
      %p95 = scmp.eq.s32.totalorder %s16, 2
      %p96 = por %p94, %p95
      %p97 = scmp.ne.s32.totalorder %s89, %s92
      %p98 = scmp.eq.s32.totalorder %s16, 0
      %p99 = por %p97, %p98
      %p100 = scmp.ne.s32.totalorder %s89, %s92
      %p101 = scmp.eq.s32.totalorder %s21, 2
      %p102 = por %p100, %p101
      %p103 = scmp.ne.s32.totalorder %s92, %s93
      %p104 = scmp.eq.s32.totalorder %s21, 0
      %p105 = por %p103, %p104
      %p106 = scmp.ne.s32.totalorder %s92, %s93
      %p107 = scmp.eq.s32.totalorder %s22, 2
      %p108 = por %p106, %p107
      %p110 = scmp.ne.s32.totalorder %s93, %s109
      %p111 = scmp.eq.s32.totalorder %s22, 0
      %p112 = por %p110, %p111
      %s113 = ssub.s32 %s16, %s23
      %p114 = scmp.eq.s32.totalorder %s113, 0
      %s116 = sadd.s32 %s115, 1
      %s117 = scalar_select %p114, %s115, %s116
      %p120 = pneg %p114
      %p121 = scmp.eq.s32.totalorder %s16, 2
      %p122 = por %p120, %p121
      %p123 = scmp.ne.s32.totalorder %s115, %s118
      %p124 = scmp.eq.s32.totalorder %s16, 0
      %p125 = por %p123, %p124
      %p126 = scmp.ne.s32.totalorder %s115, %s118
      %p127 = scmp.eq.s32.totalorder %s21, 2
      %p128 = por %p126, %p127
      %p129 = scmp.ne.s32.totalorder %s118, %s119
      %p130 = scmp.eq.s32.totalorder %s21, 0
      %p131 = por %p129, %p130
      %p132 = scmp.ne.s32.totalorder %s118, %s119
      %p133 = scmp.eq.s32.totalorder %s22, 2
      %p134 = por %p132, %p133
      %p136 = scmp.ne.s32.totalorder %s119, %s135
      %p137 = scmp.eq.s32.totalorder %s22, 0
      %p138 = por %p136, %p137
      %s139 = ssub.s32 %s16, %s23
      %p140 = scmp.eq.s32.totalorder %s139, 0
      %s142 = sadd.s32 %s141, 1
      %s143 = scalar_select %p140, %s141, %s142
      %p146 = pneg %p140
      %p147 = scmp.eq.s32.totalorder %s16, 2
      %p148 = por %p146, %p147
      %p149 = scmp.ne.s32.totalorder %s141, %s144
      %p150 = scmp.eq.s32.totalorder %s16, 0
      %p151 = por %p149, %p150
      %p152 = scmp.ne.s32.totalorder %s141, %s144
      %p153 = scmp.eq.s32.totalorder %s21, 2
      %p154 = por %p152, %p153
      %p155 = scmp.ne.s32.totalorder %s144, %s145
      %p156 = scmp.eq.s32.totalorder %s21, 0
      %p157 = por %p155, %p156
      %p158 = scmp.ne.s32.totalorder %s144, %s145
      %p159 = scmp.eq.s32.totalorder %s22, 2
      %p160 = por %p158, %p159
      %p162 = scmp.ne.s32.totalorder %s145, %s161
      %p163 = scmp.eq.s32.totalorder %s22, 0
      %p164 = por %p162, %p163
      %s166 = sadd.s32 %s165, 1
      %p169 = scmp.eq.s32.totalorder %s16, 2
      %p170 = scmp.ne.s32.totalorder %s165, %s167
      %p171 = scmp.eq.s32.totalorder %s16, 0
      %p172 = por %p170, %p171
      %p173 = scmp.ne.s32.totalorder %s165, %s167
      %p174 = scmp.eq.s32.totalorder %s21, 2
      %p175 = por %p173, %p174
      %p176 = scmp.ne.s32.totalorder %s167, %s168
      %p177 = scmp.eq.s32.totalorder %s21, 0
      %p178 = por %p176, %p177
      %p179 = scmp.ne.s32.totalorder %s167, %s168
      %p180 = scmp.eq.s32.totalorder %s22, 2
      %p181 = por %p179, %p180
      %p183 = scmp.ne.s32.totalorder %s168, %s182
      %p184 = scmp.eq.s32.totalorder %s22, 0
      %p185 = por %p183, %p184
      %s187 = sadd.s32 %s186, 1
      %p190 = scmp.eq.s32.totalorder %s16, 2
      %p191 = scmp.ne.s32.totalorder %s186, %s188
      %p192 = scmp.eq.s32.totalorder %s16, 0
      %p193 = por %p191, %p192
      %p194 = scmp.ne.s32.totalorder %s186, %s188
      %p195 = scmp.eq.s32.totalorder %s21, 2
      %p196 = por %p194, %p195
      %p197 = scmp.ne.s32.totalorder %s188, %s189
      %p198 = scmp.eq.s32.totalorder %s21, 0
      %p199 = por %p197, %p198
      %p200 = scmp.ne.s32.totalorder %s188, %s189
      %p201 = scmp.eq.s32.totalorder %s22, 2
      %p202 = por %p200, %p201
      %p204 = scmp.ne.s32.totalorder %s189, %s203
      %p205 = scmp.eq.s32.totalorder %s22, 0
      %p206 = por %p204, %p205
      %p207 = scmp.le.s32.totalorder 1, %s16
      %p208 = scmp.lt.s32.totalorder %s16, 4
      %p209 = pnand %p207, %p208
      %p210 = pneg %p209
      // Predicated region
      $region9: #{tpu_custom_call.1} parent=5 // pred_check
        _
      $region10: #{tpu_custom_call.1} parent=5 // pred_check_branch
        %212 = sbr.rel (%p209) target = $region12
      $region11: #{tpu_custom_call.1} parent=5 // pred_region
        %s213 = ssub.s32 %s16, 1
        // Predicated region
        $region13: #{tpu_custom_call.1} parent=11 // pred_check
          %p214 = pneg %p37
        $region14: #{tpu_custom_call.1} parent=11 // pred_check_branch
          %216 = sbr.rel (%p214) target = $region16
        $region15: #{tpu_custom_call.1} parent=11 // pred_region
          %s218 = ssub.s32 64, 64
          %219 = vsyncadd [#allocation6], %s218
          %s221 = sshll.u32 [#allocation5], 4
          %s222 = int_to_ptr.vmem [resolvable:$true] %s221
          %224 = dma.hbm_to_vmem [thread:$0]  %s0, 64, %s222, [#allocation6]
        $region16: #{tpu_custom_call.1} parent=11 // pred_fallthru
          _
        // Predicated region
        $region17: #{tpu_custom_call.1} parent=11 // pred_check
          %p225 = pneg %p58
        $region18: #{tpu_custom_call.1} parent=11 // pred_check_branch
          %227 = sbr.rel (%p225) target = $region20
        $region19: #{tpu_custom_call.1} parent=11 // pred_region
          %s229 = ssub.s32 1024, 1024
          %230 = vsyncadd [#allocation8], %s229
          %s231 = sshll.u32 [#allocation7], 4
          %s232 = int_to_ptr.vmem [resolvable:$true] %s231
          %237 = dma.hbm_to_vmem [thread:$0]  %s1, 1024, %s232, [#allocation8], 64, 64, 4
        $region20: #{tpu_custom_call.1} parent=11 // pred_fallthru
          _
        // Predicated region
        $region21: #{tpu_custom_call.1} parent=11 // pred_check
          %p238 = pneg %p79
        $region22: #{tpu_custom_call.1} parent=11 // pred_check_branch
          %240 = sbr.rel (%p238) target = $region24
        $region23: #{tpu_custom_call.1} parent=11 // pred_region
          _
        $region24: #{tpu_custom_call.1} parent=11 // pred_fallthru
          _
        // Predicated region
        $region25: #{tpu_custom_call.1} parent=11 // pred_check
          %p241 = pneg %p178
        $region26: #{tpu_custom_call.1} parent=11 // pred_check_branch
          %243 = sbr.rel (%p241) target = $region28
        $region27: #{tpu_custom_call.1} parent=11 // pred_region
          _
        $region28: #{tpu_custom_call.1} parent=11 // pred_fallthru
          _
      $region12: #{tpu_custom_call.1} parent=5 // pred_fallthru
        _
      %p244 = scmp.lt.s32.totalorder %s16, 3
      // Predicated region
      $region29: #{tpu_custom_call.1} parent=5 // pred_check
        %p245 = pneg %p244
      $region30: #{tpu_custom_call.1} parent=5 // pred_check_branch
        %247 = sbr.rel (%p245) target = $region32
      $region31: #{tpu_custom_call.1} parent=5 // pred_region
        // Predicated region
        $region33: #{tpu_custom_call.1} parent=31 // pred_check
          %p248 = pneg %p99
        $region34: #{tpu_custom_call.1} parent=31 // pred_check_branch
          %250 = sbr.rel (%p248) target = $region36
        $region35: #{tpu_custom_call.1} parent=31 // pred_region
          %s251 = sand.u32 %s16, 1
          %s252 = scalar_lea.sflag [#allocation6], %s251
          %s253 = sand.u32 %s89, 1
          %s254 = smul.addr %s253, 192
          %s255 = scalar_lea.vmem [#allocation9], %s254
          %s257 = ssub.s32 3072, 3072
          %258 = vsyncadd %s252, %s257
          %s259 = smul.addr %s16, 64
          %s260 = scalar_lea.hbm %s3, %s259
          %s261 = sshll.u32 %s255, 4
          %s262 = int_to_ptr.vmem [resolvable:$true] %s261
          %267 = dma.hbm_to_vmem [thread:$0]  %s260, 3072, %s262, %s252, 192, 64, 4
        $region36: #{tpu_custom_call.1} parent=31 // pred_fallthru
          _
        // Predicated region
        $region37: #{tpu_custom_call.1} parent=31 // pred_check
          %p268 = pneg %p125
        $region38: #{tpu_custom_call.1} parent=31 // pred_check_branch
          %270 = sbr.rel (%p268) target = $region40
        $region39: #{tpu_custom_call.1} parent=31 // pred_region
          %p271 = scmp.lt.s32.totalorder %s16, 2
          %s272 = scalar_select %p271, %s16, 2
          %s273 = scalar_lea.vmem %s4, %s272
        $region40: #{tpu_custom_call.1} parent=31 // pred_fallthru
          _
        // Predicated region
        $region41: #{tpu_custom_call.1} parent=31 // pred_check
          %p274 = pneg %p151
        $region42: #{tpu_custom_call.1} parent=31 // pred_check_branch
          %276 = sbr.rel (%p274) target = $region44
        $region43: #{tpu_custom_call.1} parent=31 // pred_region
          %p277 = scmp.lt.s32.totalorder %s16, 2
          %s278 = scalar_select %p277, %s16, 2
          %s279 = scalar_lea.vmem %s5, %s278
        $region44: #{tpu_custom_call.1} parent=31 // pred_fallthru
          _
      $region32: #{tpu_custom_call.1} parent=5 // pred_fallthru
        _
      %p280 = scmp.le.s32.totalorder 1, %s16
      %p281 = scmp.lt.s32.totalorder %s16, 4
      %p282 = pnand %p280, %p281
      %p283 = pneg %p282
      // Predicated region
      $region45: #{tpu_custom_call.1} parent=5 // pred_check
        _
      $region46: #{tpu_custom_call.1} parent=5 // pred_check_branch
        %285 = sbr.rel (%p282) target = $region48
      $region47: #{tpu_custom_call.1} parent=5 // pred_region
        %s286 = ssub.s32 %s16, 1
        // Predicated region
        $region49: #{tpu_custom_call.1} parent=47 // pred_check
          %p287 = pneg %p37
        $region50: #{tpu_custom_call.1} parent=47 // pred_check_branch
          %289 = sbr.rel (%p287) target = $region52
        $region51: #{tpu_custom_call.1} parent=47 // pred_region
          %290 = dma.done [#allocation6], 64
        $region52: #{tpu_custom_call.1} parent=47 // pred_fallthru
          _
        // Predicated region
        $region53: #{tpu_custom_call.1} parent=47 // pred_check
          %p291 = pneg %p58
        $region54: #{tpu_custom_call.1} parent=47 // pred_check_branch
          %293 = sbr.rel (%p291) target = $region56
        $region55: #{tpu_custom_call.1} parent=47 // pred_region
          %294 = dma.done [#allocation8], 1024
        $region56: #{tpu_custom_call.1} parent=47 // pred_fallthru
          _
        %s295 = sand.u32 %s21, 1
        %s296 = scalar_lea.sflag [#allocation6], %s295
        %s297 = sand.u32 %s92, 1
        %s298 = smul.addr %s297, 192
        %s299 = scalar_lea.vmem [#allocation9], %s298
        // Predicated region
        $region57: #{tpu_custom_call.1} parent=47 // pred_check
          %p300 = pneg %p105
        $region58: #{tpu_custom_call.1} parent=47 // pred_check_branch
          %302 = sbr.rel (%p300) target = $region60
        $region59: #{tpu_custom_call.1} parent=47 // pred_region
          %303 = dma.done %s296, 3072
        $region60: #{tpu_custom_call.1} parent=47 // pred_fallthru
          _
        %p304 = pneg %p37
        %p305 = pneg %p34
        %p306 = pneg %p58
        %p307 = pneg %p55
        %p308 = pneg %p79
        %p309 = pneg %p76
        %s310 = sand.u32 %s21, 1
        %s311 = scalar_lea.sflag [#allocation6], %s310
        %s312 = sand.u32 %s92, 1
        %s313 = smul.addr %s312, 192
        %s314 = scalar_lea.vmem [#allocation9], %s313
        %p315 = pneg %p105
        %p316 = pneg %p102
        %p317 = scmp.lt.s32.totalorder %s21, 2
        %s318 = scalar_select %p317, %s21, 2
        %s319 = scalar_lea.vmem %s4, %s318
        %p320 = pneg %p131
        %p321 = pneg %p128
        %p322 = scmp.lt.s32.totalorder %s21, 2
        %s323 = scalar_select %p322, %s21, 2
        %s324 = scalar_lea.vmem %s5, %s323
        %p325 = pneg %p157
        %p326 = pneg %p154
        %p327 = pneg %p178
        %p328 = pneg %p175
        %p329 = pneg %p199
        %p330 = pneg %p196
        %p331 = scmp.lt.s32.totalorder %s21, 2
        %s332 = scalar_select %p331, %s21, 2
        %s333 = scalar_lea.vmem %s4, %s332
        %p334 = scmp.lt.s32.totalorder %s21, 2
        %s335 = scalar_select %p334, %s21, 2
        %s336 = scalar_lea.vmem %s5, %s335
        %p338 = scmp.eq.s32.totalorder %s21, 0
        // Predicated region
        $region61: #{tpu_custom_call.1} parent=47 // pred_check
          %p339 = pneg %p338
        $region62: #{tpu_custom_call.1} parent=47 // pred_check_branch
          %341 = sbr.rel (%p339) target = $region64
        $region63: #{tpu_custom_call.1} parent=47 // pred_region
          %v342 = vld [vmem:[#allocation5] sm:$0x7]
          %v343 = vld [vmem:[#allocation7] sm:$0xf]
          %v344 = vld [vmem:[#allocation7 + $0x4] sm:$0xf]
          %v345 = vld [vmem:[#allocation7 + $0x8] sm:$0xf]
          %v346 = vld [vmem:[#allocation7 + $0xc] sm:$0xf]
          %v347 = vld [vmem:[#allocation7 + $0x10] sm:$0xf]
          %v348 = vld [vmem:[#allocation7 + $0x14] sm:$0xf]
          %v349 = vld [vmem:[#allocation7 + $0x18] sm:$0xf]
          %v350 = vld [vmem:[#allocation7 + $0x1c] sm:$0xf]
          %v351 = vld [vmem:[#allocation7 + $0x20] sm:$0xf]
          %v352 = vld [vmem:[#allocation7 + $0x24] sm:$0xf]
          %v353 = vld [vmem:[#allocation7 + $0x28] sm:$0xf]
          %v354 = vld [vmem:[#allocation7 + $0x2c] sm:$0xf]
          %v355 = vld [vmem:[#allocation7 + $0x30] sm:$0xf]
          %v356 = vld [vmem:[#allocation7 + $0x34] sm:$0xf]
          %v357 = vld [vmem:[#allocation7 + $0x38] sm:$0xf]
          %v358 = vld [vmem:[#allocation7 + $0x3c] sm:$0xf]
          %v359 = vld [vmem:[%s2] sm:$0x1]
          %v361 = vlaneseq
          %v362 = vshrl.u32 %v361, 7
          %v363 = vsub.s32 0, %v362
          %v364 = vrot.slane %v359, %v363
          %v382 = vunpack.c.l.b16 %v343
          %v383 = vunpack.c.l.b16 %v344
          %v384 = vunpack.c.l.b16 %v345
          %v385 = vunpack.c.l.b16 %v346
          %v386 = vunpack.c.l.b16 %v347
          %v387 = vunpack.c.l.b16 %v348
          %v388 = vunpack.c.l.b16 %v349
          %v389 = vunpack.c.l.b16 %v350
          %v390 = vunpack.c.l.b16 %v351
          %v391 = vunpack.c.l.b16 %v352
          %v392 = vunpack.c.l.b16 %v353
          %v393 = vunpack.c.l.b16 %v354
          %v394 = vunpack.c.l.b16 %v355
          %v395 = vunpack.c.l.b16 %v356
          %v396 = vunpack.c.l.b16 %v357
          %v397 = vunpack.c.l.b16 %v358
          %v398 = vpack.c.b16 %v383, %v382
          %v399 = vpack.c.b16 %v385, %v384
          %v400 = vpack.c.b16 %v387, %v386
          %v401 = vpack.c.b16 %v389, %v388
          %v402 = vpack.c.b16 %v391, %v390
          %v403 = vpack.c.b16 %v393, %v392
          %v404 = vpack.c.b16 %v395, %v394
          %v405 = vpack.c.b16 %v397, %v396
          %414 = vmatprep.subr.bf16.mxu0 0
          %415 = vmatpush1.bf16.msra.mxu0 %v405
          %416 = vmatprep.subr.bf16.mxu0 0
          %417 = vmatpush1.bf16.msra.mxu0 %v404
          %418 = vmatprep.subr.bf16.mxu0 0
          %419 = vmatpush1.bf16.msra.mxu0 %v403
          %420 = vmatprep.subr.bf16.mxu0 0
          %421 = vmatpush1.bf16.msra.mxu0 %v402
          %422 = vmatprep.subr.bf16.mxu0 0
          %423 = vmatpush1.bf16.msra.mxu0 %v401
          %424 = vmatprep.subr.bf16.mxu0 0
          %425 = vmatpush1.bf16.msra.mxu0 %v400
          %426 = vmatprep.subr.bf16.mxu0 0
          %427 = vmatpush1.bf16.msra.mxu0 %v399
          %428 = vmatprep.subr.bf16.mxu0 0
          %429 = vmatpush1.bf16.msra.mxu0 %v398
          %430 = vmatprep.subr.bf16.mxu0 0
          %431 = vmatpush2.bf16.msra.mxu0 0
          %432 = vmatprep.subr.bf16.mxu0 0
          %433 = vmatpush2.bf16.msra.mxu0 0
          %434 = vmatprep.subr.bf16.mxu0 0
          %435 = vmatpush2.bf16.msra.mxu0 0
          %436 = vmatprep.subr.bf16.mxu0 0
          %437 = vmatpush2.bf16.msra.mxu0 0
          %438 = vmatprep.subr.bf16.mxu0 0
          %439 = vmatpush2.bf16.msra.mxu0 0
          %440 = vmatprep.subr.bf16.mxu0 0
          %441 = vmatpush2.bf16.msra.mxu0 0
          %442 = vmatprep.subr.bf16.mxu0 0
          %443 = vmatpush2.bf16.msra.mxu0 0
          %444 = vmatprep.subr.bf16.mxu0 0
          %445 = vmatpush2.bf16.msra.mxu0 0
          %446 = vmatprep.mubr.bf16.mxu0 0
          %447 = vmatmul.mubr.bf16.gmra.mxu0 %v342
          %v448 = vpop.f32.mrf.mxu0
          %v449 = vadd.f32 %v364, %v448
          %v450 = vpop.f32.mrf.mxu0
          %v451 = vpop.f32.mrf.mxu0
          %v452 = vpop.f32.mrf.mxu0
          %453 = vdwg.mxu0
          %v454 = vmul.f32 %v449, 0.5
          %v455 = vmul.f32 %v449, 0.044715
          %v456 = vmul.f32 %v455, %v449
          %v457 = vmul.f32 %v456, %v449
          %v458 = vadd.f32 %v449, %v457
          %v459 = vmul.f32 %v458, 0.7978846
          %v460 = vtanh.pop %v459
          %v461 = vadd.f32 %v460, 1.0
          %v462 = vmul.f32 %v454, %v461
          %463 = vst [vmem:[#allocation2] sm:$0x3f] %v462
          %vm464 = vcmask 1024
          %465 = vst.msk [vmem:[#allocation3] sm:$0x3] %vm464, 0.0
        $region64: #{tpu_custom_call.1} parent=47 // pred_fallthru
          _
        %v466 = vld [vmem:[#allocation2] sm:$0x3]
        %v467 = vpack.c.bf16 %v466, %v466
        %v468 = vld [vmem:[#allocation2 + $0x2] sm:$0x3]
        %v469 = vpack.c.bf16 %v468, %v468
        %v470 = vld [vmem:[#allocation2 + $0x4] sm:$0x3]
        %v471 = vpack.c.bf16 %v470, %v470
        %v472 = vld [vmem:[%s299] sm:$0xf]
        %v473 = vld [vmem:[%s299 + $0x4] sm:$0xf]
        %v474 = vld [vmem:[%s299 + $0x8] sm:$0xf]
        %v475 = vld [vmem:[%s299 + $0xc] sm:$0xf]
        %v476 = vld [vmem:[%s299 + $0x10] sm:$0xf]
        %v477 = vld [vmem:[%s299 + $0x14] sm:$0xf]
        %v478 = vld [vmem:[%s299 + $0x18] sm:$0xf]
        %v479 = vld [vmem:[%s299 + $0x1c] sm:$0xf]
        %v480 = vld [vmem:[%s299 + $0x20] sm:$0xf]
        %v481 = vld [vmem:[%s299 + $0x24] sm:$0xf]
        %v482 = vld [vmem:[%s299 + $0x28] sm:$0xf]
        %v483 = vld [vmem:[%s299 + $0x2c] sm:$0xf]
        %v484 = vld [vmem:[%s299 + $0x30] sm:$0xf]
        %v485 = vld [vmem:[%s299 + $0x34] sm:$0xf]
        %v486 = vld [vmem:[%s299 + $0x38] sm:$0xf]
        %v487 = vld [vmem:[%s299 + $0x3c] sm:$0xf]
        %v488 = vld [vmem:[%s299 + $0x40] sm:$0xf]
        %v489 = vld [vmem:[%s299 + $0x44] sm:$0xf]
        %v490 = vld [vmem:[%s299 + $0x48] sm:$0xf]
        %v491 = vld [vmem:[%s299 + $0x4c] sm:$0xf]
        %v492 = vld [vmem:[%s299 + $0x50] sm:$0xf]
        %v493 = vld [vmem:[%s299 + $0x54] sm:$0xf]
        %v494 = vld [vmem:[%s299 + $0x58] sm:$0xf]
        %v495 = vld [vmem:[%s299 + $0x5c] sm:$0xf]
        %v496 = vld [vmem:[%s299 + $0x60] sm:$0xf]
        %v497 = vld [vmem:[%s299 + $0x64] sm:$0xf]
        %v498 = vld [vmem:[%s299 + $0x68] sm:$0xf]
        %v499 = vld [vmem:[%s299 + $0x6c] sm:$0xf]
        %v500 = vld [vmem:[%s299 + $0x70] sm:$0xf]
        %v501 = vld [vmem:[%s299 + $0x74] sm:$0xf]
        %v502 = vld [vmem:[%s299 + $0x78] sm:$0xf]
        %v503 = vld [vmem:[%s299 + $0x7c] sm:$0xf]
        %v520 = vunpack.c.l.b16 %v488
        %v521 = vunpack.c.l.b16 %v489
        %v522 = vunpack.c.l.b16 %v490
        %v523 = vunpack.c.l.b16 %v491
        %v524 = vunpack.c.l.b16 %v492
        %v525 = vunpack.c.l.b16 %v493
        %v526 = vunpack.c.l.b16 %v494
        %v527 = vunpack.c.l.b16 %v495
        %v528 = vunpack.c.l.b16 %v496
        %v529 = vunpack.c.l.b16 %v497
        %v530 = vunpack.c.l.b16 %v498
        %v531 = vunpack.c.l.b16 %v499
        %v532 = vunpack.c.l.b16 %v500
        %v533 = vunpack.c.l.b16 %v501
        %v534 = vunpack.c.l.b16 %v502
        %v535 = vunpack.c.l.b16 %v503
        %v536 = vpack.c.b16 %v521, %v520
        %v537 = vpack.c.b16 %v523, %v522
        %v538 = vpack.c.b16 %v525, %v524
        %v539 = vpack.c.b16 %v527, %v526
        %v540 = vpack.c.b16 %v529, %v528
        %v541 = vpack.c.b16 %v531, %v530
        %v542 = vpack.c.b16 %v533, %v532
        %v543 = vpack.c.b16 %v535, %v534
        %552 = vmatprep.subr.bf16.mxu0 0
        %553 = vmatpush1.bf16.msra.mxu0 %v543
        %554 = vmatprep.subr.bf16.mxu0 0
        %555 = vmatpush1.bf16.msra.mxu0 %v542
        %556 = vmatprep.subr.bf16.mxu0 0
        %557 = vmatpush1.bf16.msra.mxu0 %v541
        %558 = vmatprep.subr.bf16.mxu0 0
        %559 = vmatpush1.bf16.msra.mxu0 %v540
        %560 = vmatprep.subr.bf16.mxu0 0
        %561 = vmatpush1.bf16.msra.mxu0 %v539
        %562 = vmatprep.subr.bf16.mxu0 0
        %563 = vmatpush1.bf16.msra.mxu0 %v538
        %564 = vmatprep.subr.bf16.mxu0 0
        %565 = vmatpush1.bf16.msra.mxu0 %v537
        %566 = vmatprep.subr.bf16.mxu0 0
        %567 = vmatpush1.bf16.msra.mxu0 %v536
        %568 = vmatprep.subr.bf16.mxu0 0
        %569 = vmatpush2.bf16.msra.mxu0 0
        %570 = vmatprep.subr.bf16.mxu0 0
        %571 = vmatpush2.bf16.msra.mxu0 0
        %572 = vmatprep.subr.bf16.mxu0 0
        %573 = vmatpush2.bf16.msra.mxu0 0
        %574 = vmatprep.subr.bf16.mxu0 0
        %575 = vmatpush2.bf16.msra.mxu0 0
        %576 = vmatprep.subr.bf16.mxu0 0
        %577 = vmatpush2.bf16.msra.mxu0 0
        %578 = vmatprep.subr.bf16.mxu0 0
        %579 = vmatpush2.bf16.msra.mxu0 0
        %580 = vmatprep.subr.bf16.mxu0 0
        %581 = vmatpush2.bf16.msra.mxu0 0
        %582 = vmatprep.subr.bf16.mxu0 0
        %583 = vmatpush2.bf16.msra.mxu0 0
        %584 = vmatprep.mubr.bf16.mxu0 0
        %585 = vmatmul.mubr.bf16.gmra.mxu0 %v469
        %v586 = vpop.f32.mrf.mxu0
        %v587 = vadd.f32 0.0, %v586
        %v588 = vpop.f32.mrf.mxu0
        %v589 = vpop.f32.mrf.mxu0
        %v590 = vpop.f32.mrf.mxu0
        %591 = vdwg.mxu0
        %v608 = vunpack.c.l.b16 %v472
        %v609 = vunpack.c.l.b16 %v473
        %v610 = vunpack.c.l.b16 %v474
        %v611 = vunpack.c.l.b16 %v475
        %v612 = vunpack.c.l.b16 %v476
        %v613 = vunpack.c.l.b16 %v477
        %v614 = vunpack.c.l.b16 %v478
        %v615 = vunpack.c.l.b16 %v479
        %v616 = vunpack.c.l.b16 %v480
        %v617 = vunpack.c.l.b16 %v481
        %v618 = vunpack.c.l.b16 %v482
        %v619 = vunpack.c.l.b16 %v483
        %v620 = vunpack.c.l.b16 %v484
        %v621 = vunpack.c.l.b16 %v485
        %v622 = vunpack.c.l.b16 %v486
        %v623 = vunpack.c.l.b16 %v487
        %v624 = vpack.c.b16 %v609, %v608
        %v625 = vpack.c.b16 %v611, %v610
        %v626 = vpack.c.b16 %v613, %v612
        %v627 = vpack.c.b16 %v615, %v614
        %v628 = vpack.c.b16 %v617, %v616
        %v629 = vpack.c.b16 %v619, %v618
        %v630 = vpack.c.b16 %v621, %v620
        %v631 = vpack.c.b16 %v623, %v622
        %640 = vmatprep.subr.bf16.mxu0 0
        %641 = vmatpush1.bf16.msra.mxu0 %v631
        %642 = vmatprep.subr.bf16.mxu0 0
        %643 = vmatpush1.bf16.msra.mxu0 %v630
        %644 = vmatprep.subr.bf16.mxu0 0
        %645 = vmatpush1.bf16.msra.mxu0 %v629
        %646 = vmatprep.subr.bf16.mxu0 0
        %647 = vmatpush1.bf16.msra.mxu0 %v628
        %648 = vmatprep.subr.bf16.mxu0 0
        %649 = vmatpush1.bf16.msra.mxu0 %v627
        %650 = vmatprep.subr.bf16.mxu0 0
        %651 = vmatpush1.bf16.msra.mxu0 %v626
        %652 = vmatprep.subr.bf16.mxu0 0
        %653 = vmatpush1.bf16.msra.mxu0 %v625
        %654 = vmatprep.subr.bf16.mxu0 0
        %655 = vmatpush1.bf16.msra.mxu0 %v624
        %656 = vmatprep.subr.bf16.mxu0 0
        %657 = vmatpush2.bf16.msra.mxu0 0
        %658 = vmatprep.subr.bf16.mxu0 0
        %659 = vmatpush2.bf16.msra.mxu0 0
        %660 = vmatprep.subr.bf16.mxu0 0
        %661 = vmatpush2.bf16.msra.mxu0 0
        %662 = vmatprep.subr.bf16.mxu0 0
        %663 = vmatpush2.bf16.msra.mxu0 0
        %664 = vmatprep.subr.bf16.mxu0 0
        %665 = vmatpush2.bf16.msra.mxu0 0
        %666 = vmatprep.subr.bf16.mxu0 0
        %667 = vmatpush2.bf16.msra.mxu0 0
        %668 = vmatprep.subr.bf16.mxu0 0
        %669 = vmatpush2.bf16.msra.mxu0 0
        %670 = vmatprep.subr.bf16.mxu0 0
        %671 = vmatpush2.bf16.msra.mxu0 0
        %672 = vmatprep.mubr.bf16.mxu0 0
        %673 = vmatmul.mubr.bf16.gmra.mxu0 %v467
        %v674 = vpop.f32.mrf.mxu0
        %v675 = vadd.f32 %v587, %v674
        %v676 = vpop.f32.mrf.mxu0
        %v677 = vpop.f32.mrf.mxu0
        %v678 = vpop.f32.mrf.mxu0
        %679 = vdwg.mxu0
        %v680 = vld [vmem:[%s299 + $0x80] sm:$0xf]
        %v681 = vld [vmem:[%s299 + $0x84] sm:$0xf]
        %v682 = vld [vmem:[%s299 + $0x88] sm:$0xf]
        %v683 = vld [vmem:[%s299 + $0x8c] sm:$0xf]
        %v684 = vld [vmem:[%s299 + $0x90] sm:$0xf]
        %v685 = vld [vmem:[%s299 + $0x94] sm:$0xf]
        %v686 = vld [vmem:[%s299 + $0x98] sm:$0xf]
        %v687 = vld [vmem:[%s299 + $0x9c] sm:$0xf]
        %v688 = vld [vmem:[%s299 + $0xa0] sm:$0xf]
        %v689 = vld [vmem:[%s299 + $0xa4] sm:$0xf]
        %v690 = vld [vmem:[%s299 + $0xa8] sm:$0xf]
        %v691 = vld [vmem:[%s299 + $0xac] sm:$0xf]
        %v692 = vld [vmem:[%s299 + $0xb0] sm:$0xf]
        %v693 = vld [vmem:[%s299 + $0xb4] sm:$0xf]
        %v694 = vld [vmem:[%s299 + $0xb8] sm:$0xf]
        %v695 = vld [vmem:[%s299 + $0xbc] sm:$0xf]
        %v712 = vunpack.c.l.b16 %v680
        %v713 = vunpack.c.l.b16 %v681
        %v714 = vunpack.c.l.b16 %v682
        %v715 = vunpack.c.l.b16 %v683
        %v716 = vunpack.c.l.b16 %v684
        %v717 = vunpack.c.l.b16 %v685
        %v718 = vunpack.c.l.b16 %v686
        %v719 = vunpack.c.l.b16 %v687
        %v720 = vunpack.c.l.b16 %v688
        %v721 = vunpack.c.l.b16 %v689
        %v722 = vunpack.c.l.b16 %v690
        %v723 = vunpack.c.l.b16 %v691
        %v724 = vunpack.c.l.b16 %v692
        %v725 = vunpack.c.l.b16 %v693
        %v726 = vunpack.c.l.b16 %v694
        %v727 = vunpack.c.l.b16 %v695
        %v728 = vpack.c.b16 %v713, %v712
        %v729 = vpack.c.b16 %v715, %v714
        %v730 = vpack.c.b16 %v717, %v716
        %v731 = vpack.c.b16 %v719, %v718
        %v732 = vpack.c.b16 %v721, %v720
        %v733 = vpack.c.b16 %v723, %v722
        %v734 = vpack.c.b16 %v725, %v724
        %v735 = vpack.c.b16 %v727, %v726
        %744 = vmatprep.subr.bf16.mxu0 0
        %745 = vmatpush1.bf16.msra.mxu0 %v735
        %746 = vmatprep.subr.bf16.mxu0 0
        %747 = vmatpush1.bf16.msra.mxu0 %v734
        %748 = vmatprep.subr.bf16.mxu0 0
        %749 = vmatpush1.bf16.msra.mxu0 %v733
        %750 = vmatprep.subr.bf16.mxu0 0
        %751 = vmatpush1.bf16.msra.mxu0 %v732
        %752 = vmatprep.subr.bf16.mxu0 0
        %753 = vmatpush1.bf16.msra.mxu0 %v731
        %754 = vmatprep.subr.bf16.mxu0 0
        %755 = vmatpush1.bf16.msra.mxu0 %v730
        %756 = vmatprep.subr.bf16.mxu0 0
        %757 = vmatpush1.bf16.msra.mxu0 %v729
        %758 = vmatprep.subr.bf16.mxu0 0
        %759 = vmatpush1.bf16.msra.mxu0 %v728
        %760 = vmatprep.subr.bf16.mxu0 0
        %761 = vmatpush2.bf16.msra.mxu0 0
        %762 = vmatprep.subr.bf16.mxu0 0
        %763 = vmatpush2.bf16.msra.mxu0 0
        %764 = vmatprep.subr.bf16.mxu0 0
        %765 = vmatpush2.bf16.msra.mxu0 0
        %766 = vmatprep.subr.bf16.mxu0 0
        %767 = vmatpush2.bf16.msra.mxu0 0
        %768 = vmatprep.subr.bf16.mxu0 0
        %769 = vmatpush2.bf16.msra.mxu0 0
        %770 = vmatprep.subr.bf16.mxu0 0
        %771 = vmatpush2.bf16.msra.mxu0 0
        %772 = vmatprep.subr.bf16.mxu0 0
        %773 = vmatpush2.bf16.msra.mxu0 0
        %774 = vmatprep.subr.bf16.mxu0 0
        %775 = vmatpush2.bf16.msra.mxu0 0
        %776 = vmatprep.mubr.bf16.mxu0 0
        %777 = vmatmul.mubr.bf16.gmra.mxu0 %v471
        %v778 = vpop.f32.mrf.mxu0
        %v779 = vadd.f32 0.0, %v778
        %v780 = vpop.f32.mrf.mxu0
        %v781 = vpop.f32.mrf.mxu0
        %v782 = vpop.f32.mrf.mxu0
        %783 = vdwg.mxu0
        %v784 = vadd.f32 %v675, %v779
        %v785 = vld [vmem:[%s333] sm:$0x1]
        %v787 = vlaneseq
        %v788 = vshrl.u32 %v787, 7
        %v789 = vsub.s32 0, %v788
        %v790 = vrot.slane %v785, %v789
        %v792 = vadd.f32 %v784, %v790
        %vm793 = vcmp.ge.f32.partialorder %v792, 0.0
        %v794 = vmul.f32 %v792, 0.01
        %v795 = vsel %vm793, %v792, %v794
        %v796 = vld [vmem:[#allocation3] sm:$0x3]
        %v797 = vld [vmem:[%s336] sm:$0x1]
        %v799 = vlaneseq
        %v800 = vshrl.u32 %v799, 7
        %v801 = vsub.s32 0, %v800
        %v802 = vrot.slane %v797, %v801
        %v804 = vmul.f32 %v795, %v802
        %vm805 = vcmask 1041408
        %v806 = vsel %vm805, %v804, 0.0
        %807 = vadd.xlane.f32.xlu0 %v806
        %v808 = vpop.xlane.xlu0 %807
        %v809 = vadd.f32 %v796, %v808
        %vm810 = vcmask 1024
        %811 = vst.msk [vmem:[#allocation3] sm:$0x3] %vm810, %v809
        %p812 = scmp.eq.s32.totalorder %s21, 2
        // Predicated region
        $region65: #{tpu_custom_call.1} parent=47 // pred_check
          %p813 = pneg %p812
        $region66: #{tpu_custom_call.1} parent=47 // pred_check_branch
          %815 = sbr.rel (%p813) target = $region68
        $region67: #{tpu_custom_call.1} parent=47 // pred_region
          %v816 = vld [vmem:[#allocation3] sm:$0x3]
          %s817 = sld [smem:[#allocation4]]
          %v818 = vstv %s817
          %v819 = vadd.f32 %v816, %v818
          %v820 = vxor.u32 %v819, 2147483648
          %v821 = vmul.f32 %v820, 1.442695
          %v822 = vpow.pop %v821
          %v823 = vadd.f32 %v822, 1.0
          %v824 = vrcp.pop %v823
          %v825 = vmul.f32 1.0, %v824
          %826 = vst.msk [vmem:[%s7] sm:$0x3] %vm810, %v825
        $region68: #{tpu_custom_call.1} parent=47 // pred_fallthru
          _
        // Predicated region
        $region69: #{tpu_custom_call.1} parent=47 // pred_check
          %p827 = pneg %p196
        $region70: #{tpu_custom_call.1} parent=47 // pred_check_branch
          %829 = sbr.rel (%p827) target = $region72
        $region71: #{tpu_custom_call.1} parent=47 // pred_region
          _
        $region72: #{tpu_custom_call.1} parent=47 // pred_fallthru
          _
        // Predicated region
        $region73: #{tpu_custom_call.1} parent=47 // pred_check
          %p830 = pneg %p196
        $region74: #{tpu_custom_call.1} parent=47 // pred_check_branch
          %832 = sbr.rel (%p830) target = $region76
        $region75: #{tpu_custom_call.1} parent=47 // pred_region
          _
        $region76: #{tpu_custom_call.1} parent=47 // pred_fallthru
          _
      $region48: #{tpu_custom_call.1} parent=5 // pred_fallthru
        _
      %p833 = scmp.le.s32.totalorder 2, %s16
      // Predicated region
      $region77: #{tpu_custom_call.1} parent=5 // pred_check
        %p834 = pneg %p833
      $region78: #{tpu_custom_call.1} parent=5 // pred_check_branch
        %836 = sbr.rel (%p834) target = $region80
      $region79: #{tpu_custom_call.1} parent=5 // pred_region
        %s837 = ssub.s32 %s16, 2
      $region80: #{tpu_custom_call.1} parent=5 // pred_fallthru
        _
    $region6: #{tpu_custom_call.1} parent=1 // loop_footer
      %s20 = sadd.s32 1, %s16
    $region7: #{tpu_custom_call.1} parent=1 // loop_footer_branch
      %15 = sbr.rel target = $region3
    $region8: #{tpu_custom_call.1} parent=1 // loop_exit
      _
    %838 = vsyncpa [#allocation6], 1
    %s839 = scalar_lea.sflag [#allocation6], 1
    %840 = vsyncpa %s839, 1
    %841 = vsyncpa [#allocation8], 1

</llo_original>
